<compile_context>
chip_gen: v6e
topology: v6e:2x2x1
jax: 0.10.0
libtpu: 0.0.40
codegen_flags: <defaults>
</compile_context>

<pallas_src>
import functools

import jax
import jax.numpy as jnp
from jax.experimental import pallas as pl
from jax.experimental.pallas import tpu as pltpu

_LANES = 128
_SUBLANES = 8


def _photon_probs_kernel(x_ref, o_ref):
    # n_rep == 0 branch: deterministic photon-counting probability.
    x = x_ref[...]
    o_ref[...] = (1.0 - jnp.exp(-(x * x))).astype(o_ref.dtype)


def _photon_sample_kernel(u_ref, x_ref, o_ref, *, n_rep):
    x = x_ref[...]
    probs = 1.0 - jnp.exp(-(x * x))            # PhotonCountingP(x**2)
    # Bernoulli(probs) == (u < probs).  The PyTorch `* sign(x**2)` is redundant:
    # probs == 0 exactly where x == 0, and u < 0 is never true.
    hits = jnp.where(u_ref[...] < probs[None, :, :], 1.0, 0.0)   # (n_rep, bm, 128)
    counts = jnp.sum(hits, axis=0)
    out = counts if n_rep == 1 else counts * (1.0 / float(n_rep))
    o_ref[...] = out.astype(o_ref.dtype)


def photon_activation_coh(x, *, key=None, seed=0, n_rep=1, slope=1.0,
                          max_block_rows=1024):
    """Pallas implementation of PhotonActivationCoh(sampler='bernoulli').forward.

    `slope` only scales an intermediate that the PyTorch module immediately
    overwrites, so it has no effect on the returned value (kept for parity).
    """
    del slope
    orig_shape = x.shape
    xf = x.astype(jnp.float32).reshape(-1)
    total = xf.size

    # Lane-dense layout: pad rows to a multiple of 8 (sublanes) at minimum.
    rows = pl.cdiv(total, _LANES)
    rows = ((rows + _SUBLANES - 1) // _SUBLANES) * _SUBLANES

    # Pick the largest tile that keeps all double-buffered tiles well under the
    # default scoped-VMEM limit on every generation (v5e/v6e/v7x).
    reps = max(n_rep, 1)
    bytes_per_row = _LANES * 4 * (reps + 2)          # x + n_rep*u + out, per row
    budget = 8 << 20                                  # ~8 MiB for all 2x-buffered tiles
    block_rows = min(
        max_block_rows,
        max(_SUBLANES, (budget // (2 * bytes_per_row)) // _SUBLANES * _SUBLANES),
    )
    if rows <= block_rows:
        block_rows = rows                             # single full-extent block
    else:
        rows = ((rows + block_rows - 1) // block_rows) * block_rows

    pad = rows * _LANES - total
    if pad:
        xf = jnp.pad(xf, (0, pad))                    # pad value 0 -> probs 0 (discarded)
    x2d = xf.reshape(rows, _LANES)

    grid = (rows // block_rows,)
    params = pltpu.CompilerParams(dimension_semantics=("parallel",))

    if n_rep == 0:
        cost = pl.CostEstimate(
            flops=3 * rows * _LANES,
            transcendentals=rows * _LANES,
            bytes_accessed=8 * rows * _LANES,
        )
        out2d = pl.pallas_call(
            _photon_probs_kernel,
            out_shape=jax.ShapeDtypeStruct((rows, _LANES), jnp.float32),
            grid=grid,
            in_specs=[pl.BlockSpec((block_rows, _LANES), lambda i: (i, 0))],
            out_specs=pl.BlockSpec((block_rows, _LANES), lambda i: (i, 0)),
            compiler_params=params,
            cost_estimate=cost,
        )(x2d)
    else:
        if key is None:
            key = jax.random.PRNGKey(seed)
        u = jax.random.uniform(key, (n_rep, rows, _LANES), dtype=jnp.float32)
        cost = pl.CostEstimate(
            flops=(3 + 3 * n_rep) * rows * _LANES,
            transcendentals=rows * _LANES,
            bytes_accessed=(8 + 4 * n_rep) * rows * _LANES,
        )
        out2d = pl.pallas_call(
            functools.partial(_photon_sample_kernel, n_rep=n_rep),
            out_shape=jax.ShapeDtypeStruct((rows, _LANES), jnp.float32),
            grid=grid,
            in_specs=[
                pl.BlockSpec((n_rep, block_rows, _LANES), lambda i: (0, i, 0)),
                pl.BlockSpec((block_rows, _LANES), lambda i: (i, 0)),
            ],
            out_specs=pl.BlockSpec((block_rows, _LANES), lambda i: (i, 0)),
            compiler_params=params,
            cost_estimate=cost,
        )(u, x2d)

    return out2d.reshape(-1)[:total].reshape(orig_shape)


if __name__ == "__main__":
    key = jax.random.PRNGKey(0)
    # NCHW input, matching the PyTorch conv-style convention.
    x = jax.random.normal(key, (2, 4, 16, 16), dtype=jnp.float32)

    # n_rep == 1: single Bernoulli draw -> values in {0, 1}.
    out = photon_activation_coh(x, seed=0, n_rep=1)
    out = jax.block_until_ready(out)
    assert out.shape == x.shape and out.dtype == jnp.float32
    assert bool(jnp.all((out == 0.0) | (out == 1.0)))

    # n_rep == 4: mean of 4 draws -> multiples of 0.25 in [0, 1].
    out4 = photon_activation_coh(x, seed=1, n_rep=4)
    out4 = jax.block_until_ready(out4)
    assert bool(jnp.all((out4 >= 0.0) & (out4 <= 1.0)))
    assert bool(jnp.allclose(out4 * 4.0, jnp.round(out4 * 4.0), atol=1e-6))

    # n_rep == 0 branch returns the deterministic probabilities 1 - exp(-x^2).
    probs = photon_activation_coh(x, seed=0, n_rep=0)
    probs = jax.block_until_ready(probs)
    assert bool(jnp.allclose(probs, 1.0 - jnp.exp(-(x * x)), atol=1e-6))

    print("KERNEL_OK")
</pallas_src>

<mosaic_0001>
module attributes {stable_mosaic.version = 11 : i64} {
  func.func @_photon_sample_kernel(%arg0: i32, %arg1: memref<1x16x128xf32, #tpu.memory_space<vmem>>, %arg2: memref<16x128xf32, #tpu.memory_space<vmem>>, %arg3: memref<16x128xf32, #tpu.memory_space<vmem>>) attributes {dimension_semantics = [#tpu.dimension_semantics<parallel>], iteration_bounds = array<i64: 1>, scalar_prefetch = 0 : i64, scratch_operands = 0 : i64, tpu.core_type = #tpu.core_type<tc>, window_params = [{transform_indices = @transform_0, window_bounds = array<i64: 1, 16, 128>}, {transform_indices = @transform_1, window_bounds = array<i64: 16, 128>}, {transform_indices = @transform_2, window_bounds = array<i64: 16, 128>}]} {
    %c0 = arith.constant 0 : index
    %c0_0 = arith.constant 0 : index
    %0 = vector.load %arg2[%c0, %c0_0] : memref<16x128xf32, #tpu.memory_space<vmem>>, vector<16x128xf32>
    %1 = arith.mulf %0, %0 : vector<16x128xf32>
    %cst = arith.constant 0.000000e+00 : f32
    %2 = vector.broadcast %cst : f32 to vector<16x128xf32>
    %3 = arith.subf %2, %1 : vector<16x128xf32>
    %4 = math.exp %3 : vector<16x128xf32>
    %cst_1 = arith.constant 1.000000e+00 : f32
    %5 = vector.broadcast %cst_1 : f32 to vector<16x128xf32>
    %6 = arith.subf %5, %4 : vector<16x128xf32>
    %c0_2 = arith.constant 0 : index
    %c0_3 = arith.constant 0 : index
    %c0_4 = arith.constant 0 : index
    %7 = vector.load %arg1[%c0_2, %c0_3, %c0_4] : memref<1x16x128xf32, #tpu.memory_space<vmem>>, vector<1x16x128xf32>
    %8 = vector.shape_cast %6 : vector<16x128xf32> to vector<1x16x128xf32>
    %9 = arith.cmpf olt, %7, %8 : vector<1x16x128xf32>
    %cst_5 = arith.constant 1.000000e+00 : f32
    %cst_6 = arith.constant 0.000000e+00 : f32
    %10 = vector.broadcast %cst_5 : f32 to vector<1x16x128xf32>
    %11 = vector.broadcast %cst_6 : f32 to vector<1x16x128xf32>
    %12 = arith.select %9, %10, %11 : vector<1x16x128xi1>, vector<1x16x128xf32>
    %cst_7 = arith.constant dense<0.000000e+00> : vector<16x128xf32>
    %13 = vector.multi_reduction <add>, %12, %cst_7 [0] : vector<1x16x128xf32> to vector<16x128xf32>
    %c0_8 = arith.constant 0 : index
    %c0_9 = arith.constant 0 : index
    %14 = vector.load %arg3[%c0_8, %c0_9] : memref<16x128xf32, #tpu.memory_space<vmem>>, vector<16x128xf32>
    tpu.vector_store %arg3[%c0_8, %c0_9], %13 {strides = array<i32>} : memref<16x128xf32, #tpu.memory_space<vmem>>, vector<16x128xf32>,
    return
  }
  func.func @transform_0(%arg0: i32) -> (i32, i32, i32) {
    %c0_i32 = arith.constant 0 : i32
    %c0_i32_0 = arith.constant 0 : i32
    %c0_i32_1 = arith.constant 0 : i32
    return %c0_i32, %arg0, %c0_i32_0 : i32, i32, i32
  }
  func.func @transform_1(%arg0: i32) -> (i32, i32) {
    %c0_i32 = arith.constant 0 : i32
    %c0_i32_0 = arith.constant 0 : i32
    return %arg0, %c0_i32 : i32, i32
  }
  func.func @transform_2(%arg0: i32) -> (i32, i32) {
    %c0_i32 = arith.constant 0 : i32
    %c0_i32_0 = arith.constant 0 : i32
    return %arg0, %c0_i32 : i32, i32
  }
}

</mosaic_0001>

<llo_original>
// kernel: tpu_custom_call.1
$region0: #{tpu_custom_call.1}
  #allocation0 [shape = 'u32[]', space=smem, size = 0x4, offset = 0x4, fixed_abs, tag = 'smem constant byte address 0x4 - core index']
  #allocation1 [shape = 'u32[144,128]{1,0:T(1,128)}', space=vmem, size = 0x12000, scoped, tag = 'internal scratch']
  %s0 = inlined_call_operand.hbm [shape: f32[1,16,128], index: 0, kind: input, shape index: {}]
  %s1 = inlined_call_operand.hbm [shape: f32[16,128], index: 1, kind: input, shape index: {}]
  %s2 = inlined_call_operand.hbm [shape: f32[16,128], index: 2, kind: output, shape index: {}]
  %s3 = sld [smem:[#allocation0]]
  $region26: #{tpu_custom_call.1} parent=0
    _
  %s5 = ssub.s32 1, %s3
  %s6 = scalar_select 0, %s5, %s3
  $region1: #{tpu_custom_call.1} parent=0
    #allocation2 [shape = 'u8[8192]{0}', space=vmem, size = 0x2000, scoped, tag = 'input window, operand 0, single buffered']
    #allocation3 [shape = 's32[1]{0}', space=sflag, size = 0x4, scoped, tag = 'scoped memory for tpu_custom_call.1']
    #allocation4 [shape = 's32[1]{0}', space=sflag, size = 0x4, scoped, tag = 'scoped memory for tpu_custom_call.1']
    #allocation5 [shape = 'u8[8192]{0}', space=vmem, size = 0x2000, scoped, tag = 'input window, operand 1, single buffered']
    #allocation6 [shape = 's32[1]{0}', space=sflag, size = 0x4, scoped, tag = 'scoped memory for tpu_custom_call.1']
    #allocation7 [shape = 'u8[8192]{0}', space=vmem, size = 0x2000, scoped, tag = 'output window, operand 0, single buffered']
    %7 = vsyncpa [#allocation3], 0
    %8 = vsyncpa [#allocation6], 0
    %9 = vsyncpa [#allocation4], 0
    // Predicated region
    $region2: #{tpu_custom_call.1} parent=1 // pred_check
      _
    $region3: #{tpu_custom_call.1} parent=1 // pred_check_branch
      %11 = sbr.rel (0) target = $region5
    $region4: #{tpu_custom_call.1} parent=1 // pred_region
      %s13 = ssub.s32 256, 256
      %14 = vsyncadd [#allocation3], %s13
      %s15 = sshll.u32 [#allocation2], 4
      %s16 = int_to_ptr.vmem [resolvable:$true] %s15
      %21 = dma.hbm_to_vmem [thread:$0]  %s0, 256, %s16, [#allocation3], 128, 128, 8
    $region5: #{tpu_custom_call.1} parent=1 // pred_fallthru
      _
    // Predicated region
    $region6: #{tpu_custom_call.1} parent=1 // pred_check
      _
    $region7: #{tpu_custom_call.1} parent=1 // pred_check_branch
      %23 = sbr.rel (0) target = $region9
    $region8: #{tpu_custom_call.1} parent=1 // pred_region
      %s25 = ssub.s32 256, 256
      %26 = vsyncadd [#allocation6], %s25
      %s27 = sshll.u32 [#allocation5], 4
      %s28 = int_to_ptr.vmem [resolvable:$true] %s27
      %33 = dma.hbm_to_vmem [thread:$0]  %s1, 256, %s28, [#allocation6], 128, 128, 8
    $region9: #{tpu_custom_call.1} parent=1 // pred_fallthru
      _
    // Predicated region
    $region10: #{tpu_custom_call.1} parent=1 // pred_check
      _
    $region11: #{tpu_custom_call.1} parent=1 // pred_check_branch
      %35 = sbr.rel (0) target = $region13
    $region12: #{tpu_custom_call.1} parent=1 // pred_region
      %36 = dma.done [#allocation3], 256
    $region13: #{tpu_custom_call.1} parent=1 // pred_fallthru
      _
    // Predicated region
    $region14: #{tpu_custom_call.1} parent=1 // pred_check
      _
    $region15: #{tpu_custom_call.1} parent=1 // pred_check_branch
      %38 = sbr.rel (0) target = $region17
    $region16: #{tpu_custom_call.1} parent=1 // pred_region
      %39 = dma.done [#allocation6], 256
    $region17: #{tpu_custom_call.1} parent=1 // pred_fallthru
      _
    %v40 = vld [vmem:[#allocation5] sm:$0xff]
    %v41 = vld [vmem:[#allocation5 + $0x8] sm:$0xff]
    %v42 = vmul.f32 %v40, %v40
    %v43 = vmul.f32 %v41, %v41
    %v44 = vsub.f32 0.0, %v42
    %v45 = vsub.f32 0.0, %v43
    %v46 = vmul.f32 %v44, 1.442695
    %v47 = vpow.pop %v46
    %v48 = vmul.f32 %v45, 1.442695
    %v49 = vpow.pop %v48
    %v50 = vsub.f32 1.0, %v47
    %v51 = vsub.f32 1.0, %v49
    %v52 = vld [vmem:[#allocation2] sm:$0xff]
    %v53 = vld [vmem:[#allocation2 + $0x8] sm:$0xff]
    %vm54 = vcmp.lt.f32.partialorder %v52, %v50
    %vm55 = vcmp.lt.f32.partialorder %v53, %v51
    %v56 = vsel %vm54, 1.0, 0.0
    %v57 = vsel %vm55, 1.0, 0.0
    %v58 = vadd.f32 %v56, 0.0
    %v59 = vadd.f32 %v57, 0.0
    %60 = vst [vmem:[#allocation7] sm:$0xff] %v58
    %61 = vst [vmem:[#allocation7 + $0x8] sm:$0xff] %v59
    // Predicated region
    $region18: #{tpu_custom_call.1} parent=1 // pred_check
      _
    $region19: #{tpu_custom_call.1} parent=1 // pred_check_branch
      %63 = sbr.rel (0) target = $region21
    $region20: #{tpu_custom_call.1} parent=1 // pred_region
      %s65 = ssub.s32 256, 256
      %66 = vsyncadd [#allocation4], %s65
      %s67 = sshll.u32 [#allocation7], 4
      %s68 = int_to_ptr.vmem [resolvable:$true] %s67
      %73 = dma.vmem_to_hbm [thread:$0]  %s68, 256, %s2, [#allocation4], 128, 128, 8
    $region21: #{tpu_custom_call.1} parent=1 // pred_fallthru
      _
    // Predicated region
    $region22: #{tpu_custom_call.1} parent=1 // pred_check
      _
    $region23: #{tpu_custom_call.1} parent=1 // pred_check_branch
      %75 = sbr.rel (0) target = $region25
    $region24: #{tpu_custom_call.1} parent=1 // pred_region
      %76 = dma.done [#allocation4], 256
    $region25: #{tpu_custom_call.1} parent=1 // pred_fallthru
      _
    %77 = vsyncpa [#allocation3], 1
    %78 = vsyncpa [#allocation6], 1
    %79 = vsyncpa [#allocation4], 1

</llo_original>
